<compile_context>
chip_gen: v5e
topology: v5e:2x2
jax: 0.10.0
libtpu: 0.0.40
codegen_flags: <defaults>
</compile_context>

<pallas_src>
import functools

import jax
import jax.numpy as jnp
from jax.experimental import pallas as pl
from jax.experimental.pallas import tpu as pltpu

EPS = 1e-5  # nn.InstanceNorm2d default


def _round_down(x, m):
    return (x // m) * m


def _round_up(x, m):
    return ((x + m - 1) // m) * m


def _vmem_limit_bytes():
    # ~75% of physical VMEM: ~96 MiB on v5e/v6e, ~48 MiB on v7x.
    try:
        cap = int(getattr(pltpu.get_tpu_info(), "vmem_capacity_bytes", 64 << 20))
    except Exception:
        cap = 64 << 20
    return min((cap * 3) // 4, 100 << 20)


# --------------------------------------------------------------------------
# Fused single-pass kernel: whole spatial extent (H*W) resident on the lane
# axis, one row per (n, c) instance.
# --------------------------------------------------------------------------
def _adain_fused_kernel(x_ref, sb_ref, o_ref, *, block_rows, sb_resident):
    # x_ref : (block_rows, HW)
    # sb_ref: resident (rows_padded, 2) f32 or per-step (block_rows, 2) f32;
    #         column 0 = style scale, column 1 = style bias.
    if sb_resident:
        r0 = pl.multiple_of(pl.program_id(0) * block_rows, block_rows)
        sb = sb_ref[pl.ds(r0, block_rows), :]
    else:
        sb = sb_ref[...]
    scale = sb[:, 0:1]
    bias = sb[:, 1:2]

    x = x_ref[...].astype(jnp.float32)
    mean = jnp.mean(x, axis=-1, keepdims=True)                  # (BR, 1)
    centered = x - mean
    var = jnp.mean(centered * centered, axis=-1, keepdims=True)
    # `centered` dies here; normalize + style affine folds into one FMA.
    a = scale * jax.lax.rsqrt(var + EPS)                        # (BR, 1)
    b = bias - mean * a                                         # (BR, 1)
    o_ref[...] = (x * a + b).astype(o_ref.dtype)


# --------------------------------------------------------------------------
# Two-pass lane-tiled path for very large H*W.
# --------------------------------------------------------------------------
def _stats_kernel(x_ref, stats_ref, sum_ref, ssq_ref, *, hw, hw_block):
    j = pl.program_id(1)

    @pl.when(j == 0)
    def _():
        sum_ref[...] = jnp.zeros_like(sum_ref)
        ssq_ref[...] = jnp.zeros_like(ssq_ref)

    x = x_ref[...].astype(jnp.float32)                          # (BR, hw_block)
    if hw % hw_block != 0:
        # Mask lanes past the true spatial extent on the ragged last chunk so
        # padded garbage never enters the reduction.
        lane = jax.lax.broadcasted_iota(jnp.int32, x.shape, 1) + j * hw_block
        x = jnp.where(lane < hw, x, 0.0)
    sum_ref[...] += jnp.sum(x, axis=-1, keepdims=True)
    ssq_ref[...] += jnp.sum(x * x, axis=-1, keepdims=True)

    @pl.when(j == pl.num_programs(1) - 1)
    def _():
        inv_hw = jnp.float32(1.0 / hw)
        mean = sum_ref[...] * inv_hw
        # TODO(synk): E[x^2]-mean^2 is slightly less stable than the centered
        # form; switch to chunked Welford if f32 accumulation proves too loose.
        var = jnp.maximum(ssq_ref[...] * inv_hw - mean * mean, 0.0)
        rstd = jax.lax.rsqrt(var + EPS)
        stats_ref[...] = jnp.concatenate([mean, rstd], axis=-1)


def _apply_kernel(x_ref, ab_ref, o_ref):
    a = ab_ref[:, 0:1]
    b = ab_ref[:, 1:2]
    o_ref[...] = (x_ref[...].astype(jnp.float32) * a + b).astype(o_ref.dtype)


# --------------------------------------------------------------------------
# Wrapper
# --------------------------------------------------------------------------
def adain_forward(x, w, w_scale, b_scale, w_bias, b_bias, *,
                  block_rows=None, hw_block=None, two_pass=None):
    """x: (N, C, H, W) NCHW ; w: (N, w_dim).  Returns (N, C, H, W)."""
    N, C, H, W = x.shape
    HW = H * W
    R = N * C

    itemsize = jnp.dtype(x.dtype).itemsize
    sub_mult = 8 * max(1, 4 // itemsize)          # 8 rows for f32, 16 for bf16
    vmem_limit = _vmem_limit_bytes()
    target_bytes = 2 * 1024 * 1024                # ~2 MiB tiles ≈ 85% of HBM roofline

    # Style linears hoisted out of the streaming kernel (negligible FLOPs).
    scale = (w @ w_scale.T + b_scale).reshape(R).astype(jnp.float32)
    bias = (w @ w_bias.T + b_bias).reshape(R).astype(jnp.float32)
    sb = jnp.stack([scale, bias], axis=-1)        # (R, 2) — tiny

    x2d = x.reshape(R, HW)                        # free bitcast, row per (n, c)

    # Per-row VMEM in the fused path: 2x in + 2x out double buffers plus
    # ~2 row-widths of f32 temporaries inside the kernel body.
    fused_row_bytes = HW * (4 * itemsize + 8)
    if two_pass is None:
        two_pass = sub_mult * fused_row_bytes > (vmem_limit * 3) // 5

    if not two_pass:
        # ---------------- fused single-pass path ----------------
        if block_rows is None:
            rows_fit = _round_down(max(sub_mult, target_bytes // (HW * itemsize)),
                                   sub_mult)
            rows_vmem = _round_down(
                max(sub_mult, ((vmem_limit * 3) // 5) // fused_row_bytes), sub_mult)
            rows_fit = max(sub_mult, min(rows_fit, rows_vmem))
            # Keep >= 4 (>= 2) grid steps so both v7x TensorCores get work and
            # the DMA pipeline has something to overlap with.
            cap = _round_down(R // 4, sub_mult)
            if cap < sub_mult:
                cap = _round_down(R // 2, sub_mult)
            if cap < sub_mult:
                cap = _round_up(max(R, 1), sub_mult)
            block_rows = max(sub_mult, min(rows_fit, cap))

        grid_rows = pl.cdiv(R, block_rows)

        # Keep scale/bias resident in VMEM (one DMA total) when small enough;
        # otherwise stream small per-step blocks alongside the x tiles.
        sb_resident = grid_rows * block_rows <= 4096
        if sb_resident:
            rows_padded = grid_rows * block_rows
            if rows_padded != R:                  # tiny (R, 2) pad only, never x
                sb = jnp.pad(sb, ((0, rows_padded - R), (0, 0)))
            sb_spec = pl.BlockSpec((rows_padded, 2), lambda i: (0, 0))
        else:
            sb_spec = pl.BlockSpec((block_rows, 2), lambda i: (i, 0))

        kernel = functools.partial(_adain_fused_kernel,
                                   block_rows=block_rows,
                                   sb_resident=sb_resident)
        out = pl.pallas_call(
            kernel,
            out_shape=jax.ShapeDtypeStruct((R, HW), x.dtype),
            grid=(grid_rows,),
            in_specs=[
                pl.BlockSpec((block_rows, HW), lambda i: (i, 0)),
                sb_spec,
            ],
            out_specs=pl.BlockSpec((block_rows, HW), lambda i: (i, 0)),
            compiler_params=pltpu.CompilerParams(
                dimension_semantics=("parallel",),
                vmem_limit_bytes=vmem_limit,
            ),
        )(x2d, sb)
        return out.reshape(N, C, H, W)

    # ---------------- two-pass lane-tiled path (huge H*W) ----------------
    if hw_block is None:
        hw_block = min(_round_up(HW, 128), 8 * 1024)
    hw_block = max(128, _round_down(int(hw_block), 128))

    if block_rows is None:
        rows_fit = _round_down(max(sub_mult, target_bytes // (hw_block * itemsize)),
                               sub_mult)
        cap = _round_down(R // 4, sub_mult)
        if cap < sub_mult:
            cap = _round_down(R // 2, sub_mult)
        if cap < sub_mult:
            cap = _round_up(max(R, 1), sub_mult)
        block_rows = max(sub_mult, min(rows_fit, cap))

    grid = (pl.cdiv(R, block_rows), pl.cdiv(HW, hw_block))
    cparams = pltpu.CompilerParams(
        dimension_semantics=("parallel", "arbitrary"),
        vmem_limit_bytes=vmem_limit,
    )

    # Pass 1: per-row mean / inverse-std via chunked accumulation.
    stats = pl.pallas_call(
        functools.partial(_stats_kernel, hw=HW, hw_block=hw_block),
        out_shape=jax.ShapeDtypeStruct((R, 2), jnp.float32),
        grid=grid,
        in_specs=[pl.BlockSpec((block_rows, hw_block), lambda i, j: (i, j))],
        out_specs=pl.BlockSpec((block_rows, 2), lambda i, j: (i, 0)),
        scratch_shapes=[pltpu.VMEM((block_rows, 1), jnp.float32),
                        pltpu.VMEM((block_rows, 1), jnp.float32)],
        compiler_params=cparams,
    )(x2d)

    # Fold stats + style affine into per-row (a, b) on tiny (R, 2) arrays.
    mean = stats[:, 0:1]
    rstd = stats[:, 1:2]
    a = scale[:, None] * rstd
    b = bias[:, None] - mean * a
    ab = jnp.concatenate([a, b], axis=-1)         # (R, 2)

    # Pass 2: out = x * a + b, streamed tile by tile.
    out = pl.pallas_call(
        _apply_kernel,
        out_shape=jax.ShapeDtypeStruct((R, HW), x.dtype),
        grid=grid,
        in_specs=[
            pl.BlockSpec((block_rows, hw_block), lambda i, j: (i, j)),
            pl.BlockSpec((block_rows, 2), lambda i, j: (i, 0)),
        ],
        out_specs=pl.BlockSpec((block_rows, hw_block), lambda i, j: (i, j)),
        compiler_params=cparams,
    )(x2d, ab)

    return out.reshape(N, C, H, W)


def _reference(x, w, w_scale, b_scale, w_bias, b_bias):
    # Pure-JAX reference for validation.
    mean = jnp.mean(x, axis=(2, 3), keepdims=True)
    var = jnp.mean((x - mean) ** 2, axis=(2, 3), keepdims=True)
    normed = (x - mean) / jnp.sqrt(var + EPS)
    scale = (w @ w_scale.T + b_scale)[:, :, None, None]
    bias = (w @ w_bias.T + b_bias)[:, :, None, None]
    return normed * scale + bias


if __name__ == "__main__":
    key = jax.random.PRNGKey(0)
    kx, kw, k1, k2, k3, k4, kx2, kw2 = jax.random.split(key, 8)

    # Primary small shape (fused single-pass path).
    N, C, H, W, W_DIM = 2, 4, 16, 16, 8
    x = jax.random.normal(kx, (N, C, H, W), dtype=jnp.float32)
    w = jax.random.normal(kw, (N, W_DIM), dtype=jnp.float32)

    bound = 1.0 / (W_DIM ** 0.5)
    w_scale = jax.random.uniform(k1, (C, W_DIM), jnp.float32, -bound, bound)
    b_scale = jax.random.uniform(k2, (C,), jnp.float32, -bound, bound)
    w_bias = jax.random.uniform(k3, (C, W_DIM), jnp.float32, -bound, bound)
    b_bias = jax.random.uniform(k4, (C,), jnp.float32, -bound, bound)

    out = jax.block_until_ready(adain_forward(x, w, w_scale, b_scale, w_bias, b_bias))
    ref = _reference(x, w, w_scale, b_scale, w_bias, b_bias)
    assert out.shape == (N, C, H, W)
    assert jnp.allclose(out, ref, atol=1e-5, rtol=1e-5), "fused path mismatch"

    # Exercise the two-pass lane-tiled path at a small forced size:
    # R=16 -> 2 row tiles; H*W=320 with hw_block=128 -> 3 chunks incl. ragged.
    N2, C2, H2, W2 = 2, 8, 16, 20
    x2 = jax.random.normal(kx2, (N2, C2, H2, W2), dtype=jnp.float32)
    w2 = jax.random.normal(kw2, (N2, W_DIM), dtype=jnp.float32)
    w_scale2 = jax.random.uniform(k1, (C2, W_DIM), jnp.float32, -bound, bound)
    b_scale2 = jax.random.uniform(k2, (C2,), jnp.float32, -bound, bound)
    w_bias2 = jax.random.uniform(k3, (C2, W_DIM), jnp.float32, -bound, bound)
    b_bias2 = jax.random.uniform(k4, (C2,), jnp.float32, -bound, bound)

    out2 = jax.block_until_ready(
        adain_forward(x2, w2, w_scale2, b_scale2, w_bias2, b_bias2,
                      two_pass=True, hw_block=128))
    ref2 = _reference(x2, w2, w_scale2, b_scale2, w_bias2, b_bias2)
    assert out2.shape == (N2, C2, H2, W2)
    assert jnp.allclose(out2, ref2, atol=1e-4, rtol=1e-4), "two-pass path mismatch"

    print("KERNEL_OK")
</pallas_src>

<mosaic_0001>
module attributes {stable_mosaic.version = 11 : i64} {
  func.func @_adain_fused_kernel(%arg0: i32, %arg1: memref<8x256xf32, #tpu.memory_space<vmem>>, %arg2: memref<8x2xf32, #tpu.memory_space<vmem>>, %arg3: memref<8x256xf32, #tpu.memory_space<vmem>>) attributes {dimension_semantics = [#tpu.dimension_semantics<parallel>], iteration_bounds = array<i64: 1>, scalar_prefetch = 0 : i64, scratch_operands = 0 : i64, tpu.core_type = #tpu.core_type<tc>, window_params = [{transform_indices = @transform_0, window_bounds = array<i64: 8, 256>}, {pipeline_mode = #tpu.pipeline_mode<synchronous>, transform_indices = @transform_1, window_bounds = array<i64: 8, 2>}, {transform_indices = @transform_2, window_bounds = array<i64: 8, 256>}]} {
    %c8_i32 = arith.constant 8 : i32
    %0 = arith.muli %arg0, %c8_i32 : i32
    %1 = tpu.assume_multiple %0, 8 : i32
    %2 = arith.index_cast %1 : i32 to index
    %c0 = arith.constant 0 : index
    %3 = vector.load %arg2[%2, %c0] : memref<8x2xf32, #tpu.memory_space<vmem>>, vector<8x2xf32>
    %4 = vector.extract_strided_slice %3 {offsets = [0, 0], sizes = [8, 1], strides = [1, 1]} : vector<8x2xf32> to vector<8x1xf32>
    %5 = vector.extract_strided_slice %3 {offsets = [0, 1], sizes = [8, 1], strides = [1, 1]} : vector<8x2xf32> to vector<8x1xf32>
    %c0_0 = arith.constant 0 : index
    %c0_1 = arith.constant 0 : index
    %6 = vector.load %arg1[%c0_0, %c0_1] : memref<8x256xf32, #tpu.memory_space<vmem>>, vector<8x256xf32>
    %cst = arith.constant dense<0.000000e+00> : vector<8xf32>
    %7 = vector.multi_reduction <add>, %6, %cst [1] : vector<8x256xf32> to vector<8xf32>
    %8 = vector.shape_cast %7 : vector<8xf32> to vector<8x1xf32>
    %cst_2 = arith.constant 2.560000e+02 : f32
    %9 = vector.broadcast %cst_2 : f32 to vector<8x1xf32>
    %10 = arith.divf %8, %9 : vector<8x1xf32>
    %11 = vector.broadcast %10 : vector<8x1xf32> to vector<8x256xf32>
    %12 = arith.subf %6, %11 : vector<8x256xf32>
    %13 = arith.mulf %12, %12 : vector<8x256xf32>
    %cst_3 = arith.constant dense<0.000000e+00> : vector<8xf32>
    %14 = vector.multi_reduction <add>, %13, %cst_3 [1] : vector<8x256xf32> to vector<8xf32>
    %15 = vector.shape_cast %14 : vector<8xf32> to vector<8x1xf32>
    %cst_4 = arith.constant 2.560000e+02 : f32
    %16 = vector.broadcast %cst_4 : f32 to vector<8x1xf32>
    %17 = arith.divf %15, %16 : vector<8x1xf32>
    %cst_5 = arith.constant 9.99999974E-6 : f32
    %18 = vector.broadcast %cst_5 : f32 to vector<8x1xf32>
    %19 = arith.addf %17, %18 : vector<8x1xf32>
    %20 = math.rsqrt %19 : vector<8x1xf32>
    %21 = arith.mulf %4, %20 : vector<8x1xf32>
    %22 = arith.mulf %10, %21 : vector<8x1xf32>
    %23 = arith.subf %5, %22 : vector<8x1xf32>
    %24 = vector.broadcast %21 : vector<8x1xf32> to vector<8x256xf32>
    %25 = arith.mulf %6, %24 : vector<8x256xf32>
    %26 = vector.broadcast %23 : vector<8x1xf32> to vector<8x256xf32>
    %27 = arith.addf %25, %26 : vector<8x256xf32>
    %c0_6 = arith.constant 0 : index
    %c0_7 = arith.constant 0 : index
    %28 = vector.load %arg3[%c0_6, %c0_7] : memref<8x256xf32, #tpu.memory_space<vmem>>, vector<8x256xf32>
    tpu.vector_store %arg3[%c0_6, %c0_7], %27 {strides = array<i32>} : memref<8x256xf32, #tpu.memory_space<vmem>>, vector<8x256xf32>,
    return
  }
  func.func @transform_0(%arg0: i32) -> (i32, i32) {
    %c0_i32 = arith.constant 0 : i32
    %c0_i32_0 = arith.constant 0 : i32
    return %arg0, %c0_i32 : i32, i32
  }
  func.func @transform_1(%arg0: i32) -> (i32, i32) {
    %c0_i32 = arith.constant 0 : i32
    %c0_i32_0 = arith.constant 0 : i32
    %c0_i32_1 = arith.constant 0 : i32
    return %c0_i32, %c0_i32_0 : i32, i32
  }
  func.func @transform_2(%arg0: i32) -> (i32, i32) {
    %c0_i32 = arith.constant 0 : i32
    %c0_i32_0 = arith.constant 0 : i32
    return %arg0, %c0_i32 : i32, i32
  }
}

</mosaic_0001>

<llo_original>
// kernel: tpu_custom_call.1
$region0: #{tpu_custom_call.1}
  #allocation0 [shape = 'u32[]', space=smem, size = 0x4, offset = 0x4, fixed_abs, tag = 'smem constant byte address 0x4 - core index']
  #allocation1 [shape = 'u32[72,128]{1,0:T(1,128)}', space=vmem, size = 0x9000, scoped, tag = 'internal scratch']
  %s0 = inlined_call_operand.hbm [shape: f32[8,256], index: 0, kind: input, shape index: {}]
  %s1 = inlined_call_operand.vmem [shape: f32[8,2], index: 1, kind: input, shape index: {}]
  %s2 = inlined_call_operand.hbm [shape: f32[8,256], index: 2, kind: output, shape index: {}]
  %s3 = sld [smem:[#allocation0]]
  $region22: #{tpu_custom_call.1} parent=0
    _
  %s5 = ssub.s32 1, %s3
  %s6 = scalar_select 0, %s5, %s3
  $region1: #{tpu_custom_call.1} parent=0
    #allocation2 [shape = 'u8[8192]{0}', space=vmem, size = 0x2000, scoped, tag = 'input window, operand 0, single buffered']
    #allocation3 [shape = 's32[1]{0}', space=sflag, size = 0x4, scoped, tag = 'scoped memory for tpu_custom_call.1']
    #allocation4 [shape = 's32[1]{0}', space=sflag, size = 0x4, scoped, tag = 'scoped memory for tpu_custom_call.1']
    #allocation5 [shape = 'u8[8192]{0}', space=vmem, size = 0x2000, scoped, tag = 'output window, operand 0, single buffered']
    %7 = vsyncpa [#allocation3], 0
    %8 = vsyncpa [#allocation4], 0
    // Predicated region
    $region2: #{tpu_custom_call.1} parent=1 // pred_check
      _
    $region3: #{tpu_custom_call.1} parent=1 // pred_check_branch
      %10 = sbr.rel (0) target = $region5
    $region4: #{tpu_custom_call.1} parent=1 // pred_region
      %12 = vsyncadd [#allocation3], 0
      %s14 = sshll.u32 %s0, 4
      %s15 = int_to_ptr.hbm [resolvable:$true] %s14
      %s16 = sshll.u32 [#allocation2], 4
      %s17 = int_to_ptr.vmem [resolvable:$true] %s16
      %19 = dma.hbm_to_vmem [thread:$0]  %s15, 256, %s17, [#allocation3]
    $region5: #{tpu_custom_call.1} parent=1 // pred_fallthru
      _
    // Predicated region
    $region6: #{tpu_custom_call.1} parent=1 // pred_check
      _
    $region7: #{tpu_custom_call.1} parent=1 // pred_check_branch
      %21 = sbr.rel (0) target = $region9
    $region8: #{tpu_custom_call.1} parent=1 // pred_region
      _
    $region9: #{tpu_custom_call.1} parent=1 // pred_fallthru
      _
    // Predicated region
    $region10: #{tpu_custom_call.1} parent=1 // pred_check
      _
    $region11: #{tpu_custom_call.1} parent=1 // pred_check_branch
      %23 = sbr.rel (0) target = $region13
    $region12: #{tpu_custom_call.1} parent=1 // pred_region
      %25 = dma.done [#allocation3], 256
    $region13: #{tpu_custom_call.1} parent=1 // pred_fallthru
      _
    %s26 = smul.u32 0, 8
    %s27 = scalar_lea.vmem %s1, %s26
    %v28 = vld [vmem:[%s27] sm:$0xff]
    %v29 = vld [vmem:[#allocation2] sm:$0xff]
    %v30 = vld [vmem:[#allocation2 + $0x8] sm:$0xff]
    %v31 = vadd.f32 %v29, %v30
    %32 = vadd.xlane.f32.xlu0 %v31
    %v33 = vpop.xlane.xlu0 %32
    %v34 = vrcp.pop 256.0
    %v35 = vmul.f32 256.0, %v34
    %v36 = vsub.f32 1.0, %v35
    %v37 = vmul.f32 %v34, %v36
    %v38 = vadd.f32 %v34, %v37
    %vm39 = vweird.f32 %v34
    %v40 = vsel %vm39, %v34, %v38
    %v41 = vmul.f32 %v33, %v40
    %v42 = vsub.f32 %v29, %v41
    %v43 = vsub.f32 %v30, %v41
    %v44 = vmul.f32 %v42, %v42
    %v45 = vmul.f32 %v43, %v43
    %v46 = vadd.f32 %v44, %v45
    %47 = vadd.xlane.f32.xlu0 %v46
    %v48 = vpop.xlane.xlu0 %47
    %v49 = vmul.f32 %v48, %v40
    %v50 = vadd.f32 %v49, 1e-05
    %v51 = vrsqrt.pop %v50
    %v52 = vmul.f32 %v51, %v50
    %v53 = vmul.f32 %v52, %v51
    %v54 = vmul.f32 0.5, %v53
    %v55 = vsub.f32 1.5, %v54
    %v56 = vmul.f32 %v51, %v55
    %vm57 = vweird.f32 %v50
    %vm58 = vweird.f32 %v51
    %vm59 = vmor %vm57, %vm58
    %v60 = vsel %vm59, %v51, %v56
    %v61 = vmul.f32 %v28, %v60
    %v62 = vmul.f32 %v41, %v61
    %64 = vrot.lane.b32.xlu0 %v62, 1
    %v65 = vpop.permute.xlu0 %64
    %v67 = vsub.f32 %v28, %v65
    %69 = vset.pattern.permute.xlu0 0
    %70 = vperm.xlu0 %69, %v61
    %v71 = vpop.permute.xlu0 %70
    %v73 = vmul.f32 %v29, %v71
    %v74 = vmul.f32 %v30, %v71
    %76 = vset.pattern.permute.xlu0 1
    %77 = vperm.xlu0 %76, %v67
    %v78 = vpop.permute.xlu0 %77
    %v80 = vadd.f32 %v73, %v78
    %v81 = vadd.f32 %v74, %v78
    %82 = vst [vmem:[#allocation5] sm:$0xff] %v80
    %83 = vst [vmem:[#allocation5 + $0x8] sm:$0xff] %v81
    // Predicated region
    $region14: #{tpu_custom_call.1} parent=1 // pred_check
      _
    $region15: #{tpu_custom_call.1} parent=1 // pred_check_branch
      %85 = sbr.rel (0) target = $region17
    $region16: #{tpu_custom_call.1} parent=1 // pred_region
      %87 = vsyncadd [#allocation4], 0
      %s89 = sshll.u32 [#allocation5], 4
      %s90 = int_to_ptr.vmem [resolvable:$true] %s89
      %s91 = sshll.u32 %s2, 4
      %s92 = int_to_ptr.hbm [resolvable:$true] %s91
      %94 = dma.vmem_to_hbm [thread:$0]  %s90, 256, %s92, [#allocation4]
    $region17: #{tpu_custom_call.1} parent=1 // pred_fallthru
      _
    // Predicated region
    $region18: #{tpu_custom_call.1} parent=1 // pred_check
      _
    $region19: #{tpu_custom_call.1} parent=1 // pred_check_branch
      %96 = sbr.rel (0) target = $region21
    $region20: #{tpu_custom_call.1} parent=1 // pred_region
      %98 = dma.done [#allocation4], 256
    $region21: #{tpu_custom_call.1} parent=1 // pred_fallthru
      _
    %99 = vsyncpa [#allocation3], 1
    %100 = vsyncpa [#allocation4], 1

</llo_original>
